<compile_context>
chip_gen: v7x
topology: tpu7x:2x2x1
jax: 0.10.0
libtpu: 0.0.40
codegen_flags: <defaults>
</compile_context>

<pallas_src>
import functools

import jax
import jax.numpy as jnp
from jax.experimental import pallas as pl
from jax.experimental.pallas import tpu as pltpu


def fantasy_mlp_kernel(x_ref,
                       w1_ref, b1_ref,
                       w2_ref, b2_ref,
                       w3_ref, b3_ref,
                       wh_ref, bh_ref,
                       out_ref):
    """Forward pass for one batch tile (batch on lanes).

    x_ref  : (F, tb)            activations, matmul dtype (f32 or bf16)
    w*_ref : (out, in)          weights, matmul dtype
    b*_ref : (out, 1)  f32      biases (broadcast over the batch lanes)
    out_ref: (2, tb)   f32      row 0 = sigmoid(fantasy_head), row 1 = value
    """
    cdt = w1_ref.dtype  # matmul-input dtype; accumulation / epilogue are f32

    x = x_ref[...]
    # fc1 + relu
    h = jnp.dot(w1_ref[...], x, preferred_element_type=jnp.float32) + b1_ref[...]
    h = jnp.maximum(h, 0.0)
    # fc2 + relu
    h = jnp.dot(w2_ref[...], h.astype(cdt),
                preferred_element_type=jnp.float32) + b2_ref[...]
    h = jnp.maximum(h, 0.0)
    # fc3 + relu
    h = jnp.dot(w3_ref[...], h.astype(cdt),
                preferred_element_type=jnp.float32) + b3_ref[...]
    h = jnp.maximum(h, 0.0)

    # Fused heads: one (2, hidden//2) x (hidden//2, tb) matmul -> (2, tb).
    head = jnp.dot(wh_ref[...], h.astype(cdt),
                   preferred_element_type=jnp.float32) + bh_ref[...]

    # Exact sigmoid on row 0 only (fantasy prob); row 1 (value) passes through.
    prob_row = 1.0 / (1.0 + jnp.exp(-head[0:1, :]))
    out_ref[0:1, :] = prob_row
    out_ref[1:2, :] = head[1:2, :]


def _default_batch_tile(B, F, itemsize, cap=512, x_budget_bytes=8 << 20):
    """Pick the batch (lane) tile: a multiple of 128 dividing B, <= cap.

    cap ~512 keeps the (hidden, tb) f32 intermediates near vreg capacity
    (avoids compiler spills) while still amortizing the ~0.35 us/step grid
    overhead; the x-tile budget shrinks the cap for very wide inputs so the
    double-buffered (F, tb) tile never threatens v7x's 64 MiB VMEM.
    """
    if B % 128 != 0:
        return B                       # one full-batch tile (always legal)
    while cap > 128 and 2 * cap * F * itemsize > x_budget_bytes:
        cap -= 128
    best, t = 128, 128
    limit = min(B, cap)
    while t <= limit:
        if B % t == 0:
            best = t
        t += 128
    return best


def prepare_params(params, matmul_dtype=jnp.bfloat16):
    """One-time param prep (do this OUTSIDE the per-step forward).

    params: (w1, b1, w2, b2, w3, b3, wf, bf, wv, bv) with weights as
            (in, out) and biases as (1, out) -- i.e. y = x @ W + b.
    Returns kernel-ready params: weights transposed to (out, in) and cast to
    matmul_dtype, biases transposed to (out, 1) kept in f32, and the two
    1-wide heads fused into one (2, hidden//2) layer.
    """
    w1, b1, w2, b2, w3, b3, wf, bf, wv, bv = params
    wh = jnp.concatenate([wf, wv], axis=1)   # (hidden//2, 2)
    bh = jnp.concatenate([bf, bv], axis=1)   # (1, 2)

    def wt(w):
        return jnp.asarray(w.T, dtype=matmul_dtype)     # (out, in)

    def bt(b):
        return jnp.asarray(b.T, dtype=jnp.float32)      # (out, 1), f32

    return (wt(w1), bt(b1), wt(w2), bt(b2), wt(w3), bt(b3), wt(wh), bt(bh))


def fantasy_forward(x, prepped, *, tb=None):
    """FantasyNetwork forward pass with a single fused Pallas kernel.

    x:       (B, input_size) float32
    prepped: output of prepare_params(...)
    Returns (fantasy_prob, value), both (B, 1) float32.
    """
    B, F = x.shape
    w1t, b1t, w2t, b2t, w3t, b3t, wht, bht = prepped
    cdt = w1t.dtype

    if tb is None:
        tb = _default_batch_tile(B, F, jnp.dtype(cdt).itemsize)
    assert B % tb == 0, (B, tb)
    assert tb == B or tb % 128 == 0, tb

    # Batch onto the lane axis; cast matmul inputs once here.
    xt = x.T.astype(cdt)               # (F, B)

    def resident(arr):
        # Constant block index: fetched once, stays resident in VMEM across
        # all batch tiles (no re-DMA per grid step).
        return pl.BlockSpec(arr.shape, lambda i: (0, 0))

    grid = (B // tb,)

    out = pl.pallas_call(
        fantasy_mlp_kernel,
        out_shape=jax.ShapeDtypeStruct((2, B), jnp.float32),
        grid=grid,
        in_specs=[
            pl.BlockSpec((F, tb), lambda i: (0, i)),     # x: tiled over batch
            resident(w1t), resident(b1t),
            resident(w2t), resident(b2t),
            resident(w3t), resident(b3t),
            resident(wht), resident(bht),
        ],
        out_specs=pl.BlockSpec((2, tb), lambda i: (0, i)),
        compiler_params=pltpu.CompilerParams(
            dimension_semantics=("parallel",),           # megacore on v7x
        ),
    )(xt, w1t, b1t, w2t, b2t, w3t, b3t, wht, bht)

    # Split the fused (2, B) head output back into (B, 1) prob / value.
    prob = out[0:1, :].T
    value = out[1:2, :].T
    return prob, value


def init_params(key, input_size, hidden_size):
    """PyTorch-style (uniform +-1/sqrt(fan_in)) init.

    Weights returned as (in_features, out_features); biases as (1, out).
    """
    dims = [
        (input_size, hidden_size),        # fc1
        (hidden_size, hidden_size),       # fc2
        (hidden_size, hidden_size // 2),  # fc3
        (hidden_size // 2, 1),            # fantasy_head
        (hidden_size // 2, 1),            # value_head
    ]
    params = []
    for (fan_in, fan_out) in dims:
        key, kw, kb = jax.random.split(key, 3)
        bound = 1.0 / jnp.sqrt(jnp.float32(fan_in))
        w = jax.random.uniform(kw, (fan_in, fan_out), jnp.float32, -bound, bound)
        b = jax.random.uniform(kb, (1, fan_out), jnp.float32, -bound, bound)
        params.extend([w, b])
    return tuple(params)


def reference_forward(x, params):
    """Plain-JAX reference matching the PyTorch forward (highest precision)."""
    w1, b1, w2, b2, w3, b3, wf, bf, wv, bv = params
    dot = functools.partial(jnp.dot, precision=jax.lax.Precision.HIGHEST)
    h = jax.nn.relu(dot(x, w1) + b1)
    h = jax.nn.relu(dot(h, w2) + b2)
    h = jax.nn.relu(dot(h, w3) + b3)
    prob = jax.nn.sigmoid(dot(h, wf) + bf)
    value = dot(h, wv) + bv
    return prob, value


if __name__ == "__main__":
    # Small shapes consistent with the module.
    B, INPUT_SIZE, HIDDEN = 64, 32, 64

    key = jax.random.PRNGKey(0)
    key, kx = jax.random.split(key)
    x = jax.random.normal(kx, (B, INPUT_SIZE), jnp.float32)
    params = init_params(key, INPUT_SIZE, HIDDEN)

    ref_prob, ref_value = reference_forward(x, params)

    fwd = jax.jit(fantasy_forward)

    # f32 matmul-input path: near-exact parity with the PyTorch forward.
    prepped_f32 = prepare_params(params, matmul_dtype=jnp.float32)
    prob, value = fwd(x, prepped_f32)
    jax.block_until_ready((prob, value))
    assert prob.shape == (B, 1) and value.shape == (B, 1)
    assert jnp.allclose(value, ref_value, atol=2e-4, rtol=2e-4)
    assert jnp.allclose(prob, ref_prob, atol=2e-4, rtol=2e-4)

    # bf16 matmul-input path (default; MXU-native on v5e/v6e/v7x).
    prepped_bf16 = prepare_params(params)
    prob16, value16 = fwd(x, prepped_bf16)
    jax.block_until_ready((prob16, value16))
    assert jnp.allclose(value16, ref_value, atol=6e-2, rtol=6e-2)
    assert jnp.allclose(prob16, ref_prob, atol=6e-2, rtol=6e-2)

    # Multi-tile grid path (batch on lanes, 4 grid steps, resident weights).
    B2 = 512
    key, kx2 = jax.random.split(key)
    x2 = jax.random.normal(kx2, (B2, INPUT_SIZE), jnp.float32)
    ref_prob2, ref_value2 = reference_forward(x2, params)
    fwd_tiled = jax.jit(functools.partial(fantasy_forward, tb=128))
    prob2, value2 = fwd_tiled(x2, prepped_bf16)
    jax.block_until_ready((prob2, value2))
    assert prob2.shape == (B2, 1) and value2.shape == (B2, 1)
    assert jnp.allclose(value2, ref_value2, atol=6e-2, rtol=6e-2)
    assert jnp.allclose(prob2, ref_prob2, atol=6e-2, rtol=6e-2)

    print("KERNEL_OK")
</pallas_src>

<mosaic_0001>
module attributes {stable_mosaic.version = 11 : i64} {
  func.func @fantasy_mlp_kernel(%arg0: i32, %arg1: memref<32x64xf32, #tpu.memory_space<vmem>>, %arg2: memref<64x32xf32, #tpu.memory_space<vmem>>, %arg3: memref<64x1xf32, #tpu.memory_space<vmem>>, %arg4: memref<64x64xf32, #tpu.memory_space<vmem>>, %arg5: memref<64x1xf32, #tpu.memory_space<vmem>>, %arg6: memref<32x64xf32, #tpu.memory_space<vmem>>, %arg7: memref<32x1xf32, #tpu.memory_space<vmem>>, %arg8: memref<2x32xf32, #tpu.memory_space<vmem>>, %arg9: memref<2x1xf32, #tpu.memory_space<vmem>>, %arg10: memref<2x64xf32, #tpu.memory_space<vmem>>) attributes {dimension_semantics = [#tpu.dimension_semantics<parallel>], iteration_bounds = array<i64: 1>, scalar_prefetch = 0 : i64, scratch_operands = 0 : i64, tpu.core_type = #tpu.core_type<tc>, window_params = [{transform_indices = @transform_0, window_bounds = array<i64: 32, 64>}, {pipeline_mode = #tpu.pipeline_mode<synchronous>, transform_indices = @transform_1, window_bounds = array<i64: 64, 32>}, {pipeline_mode = #tpu.pipeline_mode<synchronous>, transform_indices = @transform_2, window_bounds = array<i64: 64, 1>}, {pipeline_mode = #tpu.pipeline_mode<synchronous>, transform_indices = @transform_3, window_bounds = array<i64: 64, 64>}, {pipeline_mode = #tpu.pipeline_mode<synchronous>, transform_indices = @transform_4, window_bounds = array<i64: 64, 1>}, {pipeline_mode = #tpu.pipeline_mode<synchronous>, transform_indices = @transform_5, window_bounds = array<i64: 32, 64>}, {pipeline_mode = #tpu.pipeline_mode<synchronous>, transform_indices = @transform_6, window_bounds = array<i64: 32, 1>}, {pipeline_mode = #tpu.pipeline_mode<synchronous>, transform_indices = @transform_7, window_bounds = array<i64: 2, 32>}, {pipeline_mode = #tpu.pipeline_mode<synchronous>, transform_indices = @transform_8, window_bounds = array<i64: 2, 1>}, {transform_indices = @transform_9, window_bounds = array<i64: 2, 64>}]} {
    %c0 = arith.constant 0 : index
    %c0_0 = arith.constant 0 : index
    %0 = vector.load %arg1[%c0, %c0_0] : memref<32x64xf32, #tpu.memory_space<vmem>>, vector<32x64xf32>
    %c0_1 = arith.constant 0 : index
    %c0_2 = arith.constant 0 : index
    %1 = vector.load %arg2[%c0_1, %c0_2] : memref<64x32xf32, #tpu.memory_space<vmem>>, vector<64x32xf32>
    %cst = arith.constant dense<0.000000e+00> : vector<64x64xf32>
    %2 = tpu.matmul %1, %0, %cst {dimension_numbers = #tpu.dot_dimension_numbers<[1], [0], [0], [1], [0, 0, 1, 1], [], []>} : vector<64x32xf32>, vector<32x64xf32>, vector<64x64xf32> -> vector<64x64xf32>
    %c0_3 = arith.constant 0 : index
    %c0_4 = arith.constant 0 : index
    %3 = vector.load %arg3[%c0_3, %c0_4] : memref<64x1xf32, #tpu.memory_space<vmem>>, vector<64x1xf32>
    %4 = vector.broadcast %3 : vector<64x1xf32> to vector<64x64xf32>
    %5 = arith.addf %2, %4 : vector<64x64xf32>
    %cst_5 = arith.constant 0.000000e+00 : f32
    %6 = vector.broadcast %cst_5 : f32 to vector<64x64xf32>
    %7 = arith.maximumf %5, %6 : vector<64x64xf32>
    %c0_6 = arith.constant 0 : index
    %c0_7 = arith.constant 0 : index
    %8 = vector.load %arg4[%c0_6, %c0_7] : memref<64x64xf32, #tpu.memory_space<vmem>>, vector<64x64xf32>
    %cst_8 = arith.constant dense<0.000000e+00> : vector<64x64xf32>
    %9 = tpu.matmul %8, %7, %cst_8 {dimension_numbers = #tpu.dot_dimension_numbers<[1], [0], [0], [1], [0, 0, 1, 1], [], []>} : vector<64x64xf32>, vector<64x64xf32>, vector<64x64xf32> -> vector<64x64xf32>
    %c0_9 = arith.constant 0 : index
    %c0_10 = arith.constant 0 : index
    %10 = vector.load %arg5[%c0_9, %c0_10] : memref<64x1xf32, #tpu.memory_space<vmem>>, vector<64x1xf32>
    %11 = vector.broadcast %10 : vector<64x1xf32> to vector<64x64xf32>
    %12 = arith.addf %9, %11 : vector<64x64xf32>
    %cst_11 = arith.constant 0.000000e+00 : f32
    %13 = vector.broadcast %cst_11 : f32 to vector<64x64xf32>
    %14 = arith.maximumf %12, %13 : vector<64x64xf32>
    %c0_12 = arith.constant 0 : index
    %c0_13 = arith.constant 0 : index
    %15 = vector.load %arg6[%c0_12, %c0_13] : memref<32x64xf32, #tpu.memory_space<vmem>>, vector<32x64xf32>
    %cst_14 = arith.constant dense<0.000000e+00> : vector<32x64xf32>
    %16 = tpu.matmul %15, %14, %cst_14 {dimension_numbers = #tpu.dot_dimension_numbers<[1], [0], [0], [1], [0, 0, 1, 1], [], []>} : vector<32x64xf32>, vector<64x64xf32>, vector<32x64xf32> -> vector<32x64xf32>
    %c0_15 = arith.constant 0 : index
    %c0_16 = arith.constant 0 : index
    %17 = vector.load %arg7[%c0_15, %c0_16] : memref<32x1xf32, #tpu.memory_space<vmem>>, vector<32x1xf32>
    %18 = vector.broadcast %17 : vector<32x1xf32> to vector<32x64xf32>
    %19 = arith.addf %16, %18 : vector<32x64xf32>
    %cst_17 = arith.constant 0.000000e+00 : f32
    %20 = vector.broadcast %cst_17 : f32 to vector<32x64xf32>
    %21 = arith.maximumf %19, %20 : vector<32x64xf32>
    %c0_18 = arith.constant 0 : index
    %c0_19 = arith.constant 0 : index
    %22 = vector.load %arg8[%c0_18, %c0_19] : memref<2x32xf32, #tpu.memory_space<vmem>>, vector<2x32xf32>
    %cst_20 = arith.constant dense<0.000000e+00> : vector<2x64xf32>
    %23 = tpu.matmul %22, %21, %cst_20 {dimension_numbers = #tpu.dot_dimension_numbers<[1], [0], [0], [1], [0, 0, 1, 1], [], []>} : vector<2x32xf32>, vector<32x64xf32>, vector<2x64xf32> -> vector<2x64xf32>
    %c0_21 = arith.constant 0 : index
    %c0_22 = arith.constant 0 : index
    %24 = vector.load %arg9[%c0_21, %c0_22] : memref<2x1xf32, #tpu.memory_space<vmem>>, vector<2x1xf32>
    %25 = vector.broadcast %24 : vector<2x1xf32> to vector<2x64xf32>
    %26 = arith.addf %23, %25 : vector<2x64xf32>
    %27 = vector.extract_strided_slice %26 {offsets = [0, 0], sizes = [1, 64], strides = [1, 1]} : vector<2x64xf32> to vector<1x64xf32>
    %cst_23 = arith.constant 0.000000e+00 : f32
    %28 = vector.broadcast %cst_23 : f32 to vector<1x64xf32>
    %29 = arith.subf %28, %27 : vector<1x64xf32>
    %30 = math.exp %29 : vector<1x64xf32>
    %cst_24 = arith.constant 1.000000e+00 : f32
    %31 = vector.broadcast %cst_24 : f32 to vector<1x64xf32>
    %32 = arith.addf %31, %30 : vector<1x64xf32>
    %cst_25 = arith.constant 1.000000e+00 : f32
    %33 = vector.broadcast %cst_25 : f32 to vector<1x64xf32>
    %34 = arith.divf %33, %32 : vector<1x64xf32>
    %c0_26 = arith.constant 0 : index
    %c0_27 = arith.constant 0 : index
    %35 = vector.load %arg10[%c0_26, %c0_27] : memref<2x64xf32, #tpu.memory_space<vmem>>, vector<1x64xf32>
    tpu.vector_store %arg10[%c0_26, %c0_27], %34 {strides = array<i32>} : memref<2x64xf32, #tpu.memory_space<vmem>>, vector<1x64xf32>,
    %36 = vector.extract_strided_slice %26 {offsets = [1, 0], sizes = [1, 64], strides = [1, 1]} : vector<2x64xf32> to vector<1x64xf32>
    %c1 = arith.constant 1 : index
    %c0_28 = arith.constant 0 : index
    %37 = vector.load %arg10[%c1, %c0_28] : memref<2x64xf32, #tpu.memory_space<vmem>>, vector<1x64xf32>
    tpu.vector_store %arg10[%c1, %c0_28], %36 {strides = array<i32>} : memref<2x64xf32, #tpu.memory_space<vmem>>, vector<1x64xf32>,
    return
  }
  func.func @transform_0(%arg0: i32) -> (i32, i32) {
    %c0_i32 = arith.constant 0 : i32
    %c0_i32_0 = arith.constant 0 : i32
    return %c0_i32, %arg0 : i32, i32
  }
  func.func @transform_1(%arg0: i32) -> (i32, i32) {
    %c0_i32 = arith.constant 0 : i32
    %c0_i32_0 = arith.constant 0 : i32
    %c0_i32_1 = arith.constant 0 : i32
    return %c0_i32, %c0_i32_0 : i32, i32
  }
  func.func @transform_2(%arg0: i32) -> (i32, i32) {
    %c0_i32 = arith.constant 0 : i32
    %c0_i32_0 = arith.constant 0 : i32
    %c0_i32_1 = arith.constant 0 : i32
    return %c0_i32, %c0_i32_0 : i32, i32
  }
  func.func @transform_3(%arg0: i32) -> (i32, i32) {
    %c0_i32 = arith.constant 0 : i32
    %c0_i32_0 = arith.constant 0 : i32
    %c0_i32_1 = arith.constant 0 : i32
    return %c0_i32, %c0_i32_0 : i32, i32
  }
  func.func @transform_4(%arg0: i32) -> (i32, i32) {
    %c0_i32 = arith.constant 0 : i32
    %c0_i32_0 = arith.constant 0 : i32
    %c0_i32_1 = arith.constant 0 : i32
    return %c0_i32, %c0_i32_0 : i32, i32
  }
  func.func @transform_5(%arg0: i32) -> (i32, i32) {
    %c0_i32 = arith.constant 0 : i32
    %c0_i32_0 = arith.constant 0 : i32
    %c0_i32_1 = arith.constant 0 : i32
    return %c0_i32, %c0_i32_0 : i32, i32
  }
  func.func @transform_6(%arg0: i32) -> (i32, i32) {
    %c0_i32 = arith.constant 0 : i32
    %c0_i32_0 = arith.constant 0 : i32
    %c0_i32_1 = arith.constant 0 : i32
    return %c0_i32, %c0_i32_0 : i32, i32
  }
  func.func @transform_7(%arg0: i32) -> (i32, i32) {
    %c0_i32 = arith.constant 0 : i32
    %c0_i32_0 = arith.constant 0 : i32
    %c0_i32_1 = arith.constant 0 : i32
    return %c0_i32, %c0_i32_0 : i32, i32
  }
  func.func @transform_8(%arg0: i32) -> (i32, i32) {
    %c0_i32 = arith.constant 0 : i32
    %c0_i32_0 = arith.constant 0 : i32
    %c0_i32_1 = arith.constant 0 : i32
    return %c0_i32, %c0_i32_0 : i32, i32
  }
  func.func @transform_9(%arg0: i32) -> (i32, i32) {
    %c0_i32 = arith.constant 0 : i32
    %c0_i32_0 = arith.constant 0 : i32
    return %c0_i32, %arg0 : i32, i32
  }
}

</mosaic_0001>

<llo_original>
// kernel: fantasy_forward.1
$region0: #{fantasy_forward.1}
  #allocation0 [shape = 'u32[]', space=smem, size = 0x4, offset = 0x4, fixed_abs, tag = 'smem constant byte address 0x4 - core index']
  #allocation1 [shape = 'u32[144,128]{1,0:T(1,128)}', space=vmem, size = 0x12000, scoped, tag = 'internal scratch']
  %s0 = inlined_call_operand.vmem [shape: f32[32,64], index: 0, kind: input, shape index: {}]
  %s1 = inlined_call_operand.vmem [shape: f32[64,32], index: 1, kind: input, shape index: {}]
  %s2 = inlined_call_operand.vmem [shape: f32[64,1], index: 2, kind: input, shape index: {}]
  %s3 = inlined_call_operand.vmem [shape: f32[64,64], index: 3, kind: input, shape index: {}]
  %s4 = inlined_call_operand.vmem [shape: f32[64,1], index: 4, kind: input, shape index: {}]
  %s5 = inlined_call_operand.vmem [shape: f32[32,64], index: 5, kind: input, shape index: {}]
  %s6 = inlined_call_operand.vmem [shape: f32[32,1], index: 6, kind: input, shape index: {}]
  %s7 = inlined_call_operand.vmem [shape: f32[2,32], index: 7, kind: input, shape index: {}]
  %s8 = inlined_call_operand.vmem [shape: f32[2,1], index: 8, kind: input, shape index: {}]
  %s9 = inlined_call_operand.vmem [shape: f32[2,64], index: 9, kind: output, shape index: {}]
  %s10 = sld [smem:[#allocation0]]
  $region46: #{fantasy_forward.1} parent=0
    _
  %s12 = ssub.s32 1, %s10
  %s13 = scalar_select 0, %s12, %s10
  // Predicated region
  $region2: #{fantasy_forward.1} parent=0 // pred_check
    _
  $region3: #{fantasy_forward.1} parent=0 // pred_check_branch
    %15 = sbr.rel (0) target = $region5
  $region4: #{fantasy_forward.1} parent=0 // pred_region
    _
  $region5: #{fantasy_forward.1} parent=0 // pred_fallthru
    _
  // Predicated region
  $region6: #{fantasy_forward.1} parent=0 // pred_check
    _
  $region7: #{fantasy_forward.1} parent=0 // pred_check_branch
    %17 = sbr.rel (0) target = $region9
  $region8: #{fantasy_forward.1} parent=0 // pred_region
    _
  $region9: #{fantasy_forward.1} parent=0 // pred_fallthru
    _
  // Predicated region
  $region10: #{fantasy_forward.1} parent=0 // pred_check
    _
  $region11: #{fantasy_forward.1} parent=0 // pred_check_branch
    %19 = sbr.rel (0) target = $region13
  $region12: #{fantasy_forward.1} parent=0 // pred_region
    _
  $region13: #{fantasy_forward.1} parent=0 // pred_fallthru
    _
  // Predicated region
  $region14: #{fantasy_forward.1} parent=0 // pred_check
    _
  $region15: #{fantasy_forward.1} parent=0 // pred_check_branch
    %21 = sbr.rel (0) target = $region17
  $region16: #{fantasy_forward.1} parent=0 // pred_region
    _
  $region17: #{fantasy_forward.1} parent=0 // pred_fallthru
    _
  // Predicated region
  $region18: #{fantasy_forward.1} parent=0 // pred_check
    _
  $region19: #{fantasy_forward.1} parent=0 // pred_check_branch
    %23 = sbr.rel (0) target = $region21
  $region20: #{fantasy_forward.1} parent=0 // pred_region
    _
  $region21: #{fantasy_forward.1} parent=0 // pred_fallthru
    _
  // Predicated region
  $region22: #{fantasy_forward.1} parent=0 // pred_check
    _
  $region23: #{fantasy_forward.1} parent=0 // pred_check_branch
    %25 = sbr.rel (0) target = $region25
  $region24: #{fantasy_forward.1} parent=0 // pred_region
    _
  $region25: #{fantasy_forward.1} parent=0 // pred_fallthru
    _
  // Predicated region
  $region26: #{fantasy_forward.1} parent=0 // pred_check
    _
  $region27: #{fantasy_forward.1} parent=0 // pred_check_branch
    %27 = sbr.rel (0) target = $region29
  $region28: #{fantasy_forward.1} parent=0 // pred_region
    _
  $region29: #{fantasy_forward.1} parent=0 // pred_fallthru
    _
  // Predicated region
  $region30: #{fantasy_forward.1} parent=0 // pred_check
    _
  $region31: #{fantasy_forward.1} parent=0 // pred_check_branch
    %29 = sbr.rel (0) target = $region33
  $region32: #{fantasy_forward.1} parent=0 // pred_region
    _
  $region33: #{fantasy_forward.1} parent=0 // pred_fallthru
    _
  // Predicated region
  $region34: #{fantasy_forward.1} parent=0 // pred_check
    _
  $region35: #{fantasy_forward.1} parent=0 // pred_check_branch
    %31 = sbr.rel (0) target = $region37
  $region36: #{fantasy_forward.1} parent=0 // pred_region
    _
  $region37: #{fantasy_forward.1} parent=0 // pred_fallthru
    _
  %v32 = vld [vmem:[%s0] sm:$0xff]
  %v33 = vld [vmem:[%s0 + $0x8] sm:$0xff]
  %v34 = vld [vmem:[%s0 + $0x10] sm:$0xff]
  %v35 = vld [vmem:[%s0 + $0x18] sm:$0xff]
  %v36 = vld [vmem:[%s1] sm:$0xff]
  %v37 = vld [vmem:[%s1 + $0x8] sm:$0xff]
  %v38 = vld [vmem:[%s1 + $0x10] sm:$0xff]
  %v39 = vld [vmem:[%s1 + $0x18] sm:$0xff]
  %v40 = vld [vmem:[%s1 + $0x20] sm:$0xff]
  %v41 = vld [vmem:[%s1 + $0x28] sm:$0xff]
  %v42 = vld [vmem:[%s1 + $0x30] sm:$0xff]
  %v43 = vld [vmem:[%s1 + $0x38] sm:$0xff]
  %v44 = vld [vmem:[%s2] sm:$0xff]
  %v45 = vld [vmem:[%s2 + $0x8] sm:$0xff]
  %v46 = vld [vmem:[%s2 + $0x10] sm:$0xff]
  %v47 = vld [vmem:[%s2 + $0x18] sm:$0xff]
  %v48 = vld [vmem:[%s2 + $0x20] sm:$0xff]
  %v49 = vld [vmem:[%s2 + $0x28] sm:$0xff]
  %v50 = vld [vmem:[%s2 + $0x30] sm:$0xff]
  %v51 = vld [vmem:[%s2 + $0x38] sm:$0xff]
  %53 = vset.pattern.permute.xlu0 0
  %54 = vperm.xlu0 %53, %v44
  %v55 = vpop.permute.xlu0 %54
  %58 = vset.pattern.permute.xlu0 0
  %59 = vperm.xlu0 %58, %v45
  %v60 = vpop.permute.xlu0 %59
  %63 = vset.pattern.permute.xlu0 0
  %64 = vperm.xlu0 %63, %v46
  %v65 = vpop.permute.xlu0 %64
  %68 = vset.pattern.permute.xlu0 0
  %69 = vperm.xlu0 %68, %v47
  %v70 = vpop.permute.xlu0 %69
  %73 = vset.pattern.permute.xlu0 0
  %74 = vperm.xlu0 %73, %v48
  %v75 = vpop.permute.xlu0 %74
  %78 = vset.pattern.permute.xlu0 0
  %79 = vperm.xlu0 %78, %v49
  %v80 = vpop.permute.xlu0 %79
  %83 = vset.pattern.permute.xlu0 0
  %84 = vperm.xlu0 %83, %v50
  %v85 = vpop.permute.xlu0 %84
  %88 = vset.pattern.permute.xlu0 0
  %89 = vperm.xlu0 %88, %v51
  %v90 = vpop.permute.xlu0 %89
  %vm92 = vcmask 261120
  %v94 = vsel %vm92, %v36, 0
  %v97 = vsel %vm92, %v37, 0
  %v100 = vsel %vm92, %v38, 0
  %v103 = vsel %vm92, %v39, 0
  %v106 = vsel %vm92, %v40, 0
  %v109 = vsel %vm92, %v41, 0
  %v112 = vsel %vm92, %v42, 0
  %v115 = vsel %vm92, %v43, 0
  %117 = vmatprep.subr.mxu0 0.0
  %118 = vmatpush1.msra.mxu0 %v32
  %119 = vmatprep.subr.mxu0 0.0
  %120 = vmatpush1.msra.mxu0 %v33
  %121 = vmatprep.subr.mxu0 0.0
  %122 = vmatpush1.msra.mxu0 %v34
  %123 = vmatprep.subr.mxu0 0.0
  %124 = vmatpush1.msra.mxu0 %v35
  %125 = vmatprep.subr.mxu0 0.0
  %126 = vmatpush1.msra.mxu0 0.0
  %127 = vmatprep.subr.mxu0 0.0
  %128 = vmatpush1.msra.mxu0 0.0
  %129 = vmatprep.subr.mxu0 0.0
  %130 = vmatpush1.msra.mxu0 0.0
  %131 = vmatprep.subr.mxu0 0.0
  %132 = vmatpush1.msra.mxu0 0.0
  %133 = vmatprep.subr.mxu0 0.0
  %134 = vmatpush1.msra.mxu0 0.0
  %135 = vmatprep.subr.mxu0 0.0
  %136 = vmatpush1.msra.mxu0 0.0
  %137 = vmatprep.subr.mxu0 0.0
  %138 = vmatpush1.msra.mxu0 0.0
  %139 = vmatprep.subr.mxu0 0.0
  %140 = vmatpush1.msra.mxu0 0.0
  %141 = vmatprep.subr.mxu0 0.0
  %142 = vmatpush1.msra.mxu0 0.0
  %143 = vmatprep.subr.mxu0 0.0
  %144 = vmatpush1.msra.mxu0 0.0
  %145 = vmatprep.subr.mxu0 0.0
  %146 = vmatpush1.msra.mxu0 0.0
  %147 = vmatprep.subr.mxu0 0.0
  %148 = vmatpush1.msra.mxu0 0.0
  %149 = vmatprep.subr.mxu0 0.0
  %150 = vmatpush1.msra.mxu0 0.0
  %151 = vmatprep.subr.mxu0 0.0
  %152 = vmatpush1.msra.mxu0 0.0
  %153 = vmatprep.subr.mxu0 0.0
  %154 = vmatpush1.msra.mxu0 0.0
  %155 = vmatprep.subr.mxu0 0.0
  %156 = vmatpush1.msra.mxu0 0.0
  %157 = vmatprep.subr.mxu0 0.0
  %158 = vmatpush1.msra.mxu0 0.0
  %159 = vmatprep.subr.mxu0 0.0
  %160 = vmatpush1.msra.mxu0 0.0
  %161 = vmatprep.subr.mxu0 0.0
  %162 = vmatpush1.msra.mxu0 0.0
  %163 = vmatprep.subr.mxu0 0.0
  %164 = vmatpush1.msra.mxu0 0.0
  %165 = vmatprep.subr.mxu0 0.0
  %166 = vmatpush1.msra.mxu0 0.0
  %167 = vmatprep.subr.mxu0 0.0
  %168 = vmatpush1.msra.mxu0 0.0
  %169 = vmatprep.subr.mxu0 0.0
  %170 = vmatpush1.msra.mxu0 0.0
  %171 = vmatprep.subr.mxu0 0.0
  %172 = vmatpush1.msra.mxu0 0.0
  %173 = vmatprep.subr.mxu0 0.0
  %174 = vmatpush1.msra.mxu0 0.0
  %175 = vmatprep.subr.mxu0 0.0
  %176 = vmatpush1.msra.mxu0 0.0
  %177 = vmatprep.subr.mxu0 0.0
  %178 = vmatpush1.msra.mxu0 0.0
  %179 = vmatprep.subr.mxu0 0.0
  %180 = vmatpush1.msra.mxu0 0.0
  %181 = vmatprep.mubr.f32.mxu0 0.0
  %182 = vmatmul.mubr.f32.gmra.mrb[0].mxu0 %v94
  %v183 = vpop.f32.mrb[0].mxu0
  %v184 = vadd.f32 %v55, %v183
  %v185 = vpop.f32.mrb[0].mxu0
  %186 = vmatprep.mubr.f32.mxu0 0.0
  %187 = vmatmul.mubr.f32.gmra.mrb[0].mxu0 %v97
  %v188 = vpop.f32.mrb[0].mxu0
  %v189 = vadd.f32 %v60, %v188
  %v190 = vpop.f32.mrb[0].mxu0
  %191 = vmatprep.mubr.f32.mxu0 0.0
  %192 = vmatmul.mubr.f32.gmra.mrb[0].mxu0 %v100
  %v193 = vpop.f32.mrb[0].mxu0
  %v194 = vadd.f32 %v65, %v193
  %v195 = vpop.f32.mrb[0].mxu0
  %196 = vmatprep.mubr.f32.mxu0 0.0
  %197 = vmatmul.mubr.f32.gmra.mrb[0].mxu0 %v103
  %v198 = vpop.f32.mrb[0].mxu0
  %v199 = vadd.f32 %v70, %v198
  %v200 = vpop.f32.mrb[0].mxu0
  %201 = vmatprep.mubr.f32.mxu0 0.0
  %202 = vmatmul.mubr.f32.gmra.mrb[0].mxu0 %v106
  %v203 = vpop.f32.mrb[0].mxu0
  %v204 = vadd.f32 %v75, %v203
  %v205 = vpop.f32.mrb[0].mxu0
  %206 = vmatprep.mubr.f32.mxu0 0.0
  %207 = vmatmul.mubr.f32.gmra.mrb[0].mxu0 %v109
  %v208 = vpop.f32.mrb[0].mxu0
  %v209 = vadd.f32 %v80, %v208
  %v210 = vpop.f32.mrb[0].mxu0
  %211 = vmatprep.mubr.f32.mxu0 0.0
  %212 = vmatmul.mubr.f32.gmra.mrb[0].mxu0 %v112
  %v213 = vpop.f32.mrb[0].mxu0
  %v214 = vadd.f32 %v85, %v213
  %v215 = vpop.f32.mrb[0].mxu0
  %216 = vmatprep.mubr.f32.mxu0 0.0
  %217 = vmatmul.mubr.f32.gmra.mrb[0].mxu0 %v115
  %v218 = vpop.f32.mrb[0].mxu0
  %v219 = vadd.f32 %v90, %v218
  %v220 = vpop.f32.mrb[0].mxu0
  %221 = vdwg.mxu0
  %v222 = vmax.f32 %v184, 0.0
  %v223 = vmax.f32 %v189, 0.0
  %v224 = vmax.f32 %v194, 0.0
  %v225 = vmax.f32 %v199, 0.0
  %v226 = vmax.f32 %v204, 0.0
  %v227 = vmax.f32 %v209, 0.0
  %v228 = vmax.f32 %v214, 0.0
  %v229 = vmax.f32 %v219, 0.0
  %v230 = vld [vmem:[%s3] sm:$0xff]
  %v231 = vld [vmem:[%s3 + $0x8] sm:$0xff]
  %v232 = vld [vmem:[%s3 + $0x10] sm:$0xff]
  %v233 = vld [vmem:[%s3 + $0x18] sm:$0xff]
  %v234 = vld [vmem:[%s3 + $0x20] sm:$0xff]
  %v235 = vld [vmem:[%s3 + $0x28] sm:$0xff]
  %v236 = vld [vmem:[%s3 + $0x30] sm:$0xff]
  %v237 = vld [vmem:[%s3 + $0x38] sm:$0xff]
  %v238 = vld [vmem:[%s4] sm:$0xff]
  %v239 = vld [vmem:[%s4 + $0x8] sm:$0xff]
  %v240 = vld [vmem:[%s4 + $0x10] sm:$0xff]
  %v241 = vld [vmem:[%s4 + $0x18] sm:$0xff]
  %v242 = vld [vmem:[%s4 + $0x20] sm:$0xff]
  %v243 = vld [vmem:[%s4 + $0x28] sm:$0xff]
  %v244 = vld [vmem:[%s4 + $0x30] sm:$0xff]
  %v245 = vld [vmem:[%s4 + $0x38] sm:$0xff]
  %247 = vset.pattern.permute.xlu0 0
  %248 = vperm.xlu0 %247, %v238
  %v249 = vpop.permute.xlu0 %248
  %252 = vset.pattern.permute.xlu0 0
  %253 = vperm.xlu0 %252, %v239
  %v254 = vpop.permute.xlu0 %253
  %257 = vset.pattern.permute.xlu0 0
  %258 = vperm.xlu0 %257, %v240
  %v259 = vpop.permute.xlu0 %258
  %262 = vset.pattern.permute.xlu0 0
  %263 = vperm.xlu0 %262, %v241
  %v264 = vpop.permute.xlu0 %263
  %267 = vset.pattern.permute.xlu0 0
  %268 = vperm.xlu0 %267, %v242
  %v269 = vpop.permute.xlu0 %268
  %272 = vset.pattern.permute.xlu0 0
  %273 = vperm.xlu0 %272, %v243
  %v274 = vpop.permute.xlu0 %273
  %277 = vset.pattern.permute.xlu0 0
  %278 = vperm.xlu0 %277, %v244
  %v279 = vpop.permute.xlu0 %278
  %282 = vset.pattern.permute.xlu0 0
  %283 = vperm.xlu0 %282, %v245
  %v284 = vpop.permute.xlu0 %283
  %vm286 = vcmask 523264
  %v288 = vsel %vm286, %v230, 0
  %v291 = vsel %vm286, %v231, 0
  %v294 = vsel %vm286, %v232, 0
  %v297 = vsel %vm286, %v233, 0
  %v300 = vsel %vm286, %v234, 0
  %v303 = vsel %vm286, %v235, 0
  %v306 = vsel %vm286, %v236, 0
  %v309 = vsel %vm286, %v237, 0
  %311 = vmatprep.subr.mxu0 0.0
  %312 = vmatpush1.msra.mxu0 %v222
  %313 = vmatprep.subr.mxu0 0.0
  %314 = vmatpush1.msra.mxu0 %v223
  %315 = vmatprep.subr.mxu0 0.0
  %316 = vmatpush1.msra.mxu0 %v224
  %317 = vmatprep.subr.mxu0 0.0
  %318 = vmatpush1.msra.mxu0 %v225
  %319 = vmatprep.subr.mxu0 0.0
  %320 = vmatpush1.msra.mxu0 %v226
  %321 = vmatprep.subr.mxu0 0.0
  %322 = vmatpush1.msra.mxu0 %v227
  %323 = vmatprep.subr.mxu0 0.0
  %324 = vmatpush1.msra.mxu0 %v228
  %325 = vmatprep.subr.mxu0 0.0
  %326 = vmatpush1.msra.mxu0 %v229
  %327 = vmatprep.subr.mxu0 0.0
  %328 = vmatpush1.msra.mxu0 0.0
  %329 = vmatprep.subr.mxu0 0.0
  %330 = vmatpush1.msra.mxu0 0.0
  %331 = vmatprep.subr.mxu0 0.0
  %332 = vmatpush1.msra.mxu0 0.0
  %333 = vmatprep.subr.mxu0 0.0
  %334 = vmatpush1.msra.mxu0 0.0
  %335 = vmatprep.subr.mxu0 0.0
  %336 = vmatpush1.msra.mxu0 0.0
  %337 = vmatprep.subr.mxu0 0.0
  %338 = vmatpush1.msra.mxu0 0.0
  %339 = vmatprep.subr.mxu0 0.0
  %340 = vmatpush1.msra.mxu0 0.0
  %341 = vmatprep.subr.mxu0 0.0
  %342 = vmatpush1.msra.mxu0 0.0
  %343 = vmatprep.subr.mxu0 0.0
  %344 = vmatpush1.msra.mxu0 0.0
  %345 = vmatprep.subr.mxu0 0.0
  %346 = vmatpush1.msra.mxu0 0.0
  %347 = vmatprep.subr.mxu0 0.0
  %348 = vmatpush1.msra.mxu0 0.0
  %349 = vmatprep.subr.mxu0 0.0
  %350 = vmatpush1.msra.mxu0 0.0
  %351 = vmatprep.subr.mxu0 0.0
  %352 = vmatpush1.msra.mxu0 0.0
  %353 = vmatprep.subr.mxu0 0.0
  %354 = vmatpush1.msra.mxu0 0.0
  %355 = vmatprep.subr.mxu0 0.0
  %356 = vmatpush1.msra.mxu0 0.0
  %357 = vmatprep.subr.mxu0 0.0
  %358 = vmatpush1.msra.mxu0 0.0
  %359 = vmatprep.subr.mxu0 0.0
  %360 = vmatpush1.msra.mxu0 0.0
  %361 = vmatprep.subr.mxu0 0.0
  %362 = vmatpush1.msra.mxu0 0.0
  %363 = vmatprep.subr.mxu0 0.0
  %364 = vmatpush1.msra.mxu0 0.0
  %365 = vmatprep.subr.mxu0 0.0
  %366 = vmatpush1.msra.mxu0 0.0
  %367 = vmatprep.subr.mxu0 0.0
  %368 = vmatpush1.msra.mxu0 0.0
  %369 = vmatprep.subr.mxu0 0.0
  %370 = vmatpush1.msra.mxu0 0.0
  %371 = vmatprep.subr.mxu0 0.0
  %372 = vmatpush1.msra.mxu0 0.0
  %373 = vmatprep.subr.mxu0 0.0
  %374 = vmatpush1.msra.mxu0 0.0
  %375 = vmatprep.mubr.f32.mxu0 0.0
  %376 = vmatmul.mubr.f32.gmra.mrb[0].mxu0 %v288
  %v377 = vpop.f32.mrb[0].mxu0
  %v378 = vadd.f32 %v249, %v377
  %v379 = vpop.f32.mrb[0].mxu0
  %380 = vmatprep.mubr.f32.mxu0 0.0
  %381 = vmatmul.mubr.f32.gmra.mrb[0].mxu0 %v291
  %v382 = vpop.f32.mrb[0].mxu0
  %v383 = vadd.f32 %v254, %v382
  %v384 = vpop.f32.mrb[0].mxu0
  %385 = vmatprep.mubr.f32.mxu0 0.0
  %386 = vmatmul.mubr.f32.gmra.mrb[0].mxu0 %v294
  %v387 = vpop.f32.mrb[0].mxu0
  %v388 = vadd.f32 %v259, %v387
  %v389 = vpop.f32.mrb[0].mxu0
  %390 = vmatprep.mubr.f32.mxu0 0.0
  %391 = vmatmul.mubr.f32.gmra.mrb[0].mxu0 %v297
  %v392 = vpop.f32.mrb[0].mxu0
  %v393 = vadd.f32 %v264, %v392
  %v394 = vpop.f32.mrb[0].mxu0
  %395 = vmatprep.mubr.f32.mxu0 0.0
  %396 = vmatmul.mubr.f32.gmra.mrb[0].mxu0 %v300
  %v397 = vpop.f32.mrb[0].mxu0
  %v398 = vadd.f32 %v269, %v397
  %v399 = vpop.f32.mrb[0].mxu0
  %400 = vmatprep.mubr.f32.mxu0 0.0
  %401 = vmatmul.mubr.f32.gmra.mrb[0].mxu0 %v303
  %v402 = vpop.f32.mrb[0].mxu0
  %v403 = vadd.f32 %v274, %v402
  %v404 = vpop.f32.mrb[0].mxu0
  %405 = vmatprep.mubr.f32.mxu0 0.0
  %406 = vmatmul.mubr.f32.gmra.mrb[0].mxu0 %v306
  %v407 = vpop.f32.mrb[0].mxu0
  %v408 = vadd.f32 %v279, %v407
  %v409 = vpop.f32.mrb[0].mxu0
  %410 = vmatprep.mubr.f32.mxu0 0.0
  %411 = vmatmul.mubr.f32.gmra.mrb[0].mxu0 %v309
  %v412 = vpop.f32.mrb[0].mxu0
  %v413 = vadd.f32 %v284, %v412
  %v414 = vpop.f32.mrb[0].mxu0
  %415 = vdwg.mxu0
  %v416 = vmax.f32 %v378, 0.0
  %v417 = vmax.f32 %v383, 0.0
  %v418 = vmax.f32 %v388, 0.0
  %v419 = vmax.f32 %v393, 0.0
  %v420 = vmax.f32 %v398, 0.0
  %v421 = vmax.f32 %v403, 0.0
  %v422 = vmax.f32 %v408, 0.0
  %v423 = vmax.f32 %v413, 0.0
  %v424 = vld [vmem:[%s5] sm:$0xff]
  %v425 = vld [vmem:[%s5 + $0x8] sm:$0xff]
  %v426 = vld [vmem:[%s5 + $0x10] sm:$0xff]
  %v427 = vld [vmem:[%s5 + $0x18] sm:$0xff]
  %v428 = vld [vmem:[%s6] sm:$0xff]
  %v429 = vld [vmem:[%s6 + $0x8] sm:$0xff]
  %v430 = vld [vmem:[%s6 + $0x10] sm:$0xff]
  %v431 = vld [vmem:[%s6 + $0x18] sm:$0xff]
  %433 = vset.pattern.permute.xlu0 0
  %434 = vperm.xlu0 %433, %v428
  %v435 = vpop.permute.xlu0 %434
  %438 = vset.pattern.permute.xlu0 0
  %439 = vperm.xlu0 %438, %v429
  %v440 = vpop.permute.xlu0 %439
  %443 = vset.pattern.permute.xlu0 0
  %444 = vperm.xlu0 %443, %v430
  %v445 = vpop.permute.xlu0 %444
  %448 = vset.pattern.permute.xlu0 0
  %449 = vperm.xlu0 %448, %v431
  %v450 = vpop.permute.xlu0 %449
  %v453 = vsel %vm286, %v424, 0
  %v456 = vsel %vm286, %v425, 0
  %v459 = vsel %vm286, %v426, 0
  %v462 = vsel %vm286, %v427, 0
  %464 = vmatprep.subr.mxu0 0.0
  %465 = vmatpush1.msra.mxu0 %v416
  %466 = vmatprep.subr.mxu0 0.0
  %467 = vmatpush1.msra.mxu0 %v417
  %468 = vmatprep.subr.mxu0 0.0
  %469 = vmatpush1.msra.mxu0 %v418
  %470 = vmatprep.subr.mxu0 0.0
  %471 = vmatpush1.msra.mxu0 %v419
  %472 = vmatprep.subr.mxu0 0.0
  %473 = vmatpush1.msra.mxu0 %v420
  %474 = vmatprep.subr.mxu0 0.0
  %475 = vmatpush1.msra.mxu0 %v421
  %476 = vmatprep.subr.mxu0 0.0
  %477 = vmatpush1.msra.mxu0 %v422
  %478 = vmatprep.subr.mxu0 0.0
  %479 = vmatpush1.msra.mxu0 %v423
  %480 = vmatprep.subr.mxu0 0.0
  %481 = vmatpush1.msra.mxu0 0.0
  %482 = vmatprep.subr.mxu0 0.0
  %483 = vmatpush1.msra.mxu0 0.0
  %484 = vmatprep.subr.mxu0 0.0
  %485 = vmatpush1.msra.mxu0 0.0
  %486 = vmatprep.subr.mxu0 0.0
  %487 = vmatpush1.msra.mxu0 0.0
  %488 = vmatprep.subr.mxu0 0.0
  %489 = vmatpush1.msra.mxu0 0.0
  %490 = vmatprep.subr.mxu0 0.0
  %491 = vmatpush1.msra.mxu0 0.0
  %492 = vmatprep.subr.mxu0 0.0
  %493 = vmatpush1.msra.mxu0 0.0
  %494 = vmatprep.subr.mxu0 0.0
  %495 = vmatpush1.msra.mxu0 0.0
  %496 = vmatprep.subr.mxu0 0.0
  %497 = vmatpush1.msra.mxu0 0.0
  %498 = vmatprep.subr.mxu0 0.0
  %499 = vmatpush1.msra.mxu0 0.0
  %500 = vmatprep.subr.mxu0 0.0
  %501 = vmatpush1.msra.mxu0 0.0
  %502 = vmatprep.subr.mxu0 0.0
  %503 = vmatpush1.msra.mxu0 0.0
  %504 = vmatprep.subr.mxu0 0.0
  %505 = vmatpush1.msra.mxu0 0.0
  %506 = vmatprep.subr.mxu0 0.0
  %507 = vmatpush1.msra.mxu0 0.0
  %508 = vmatprep.subr.mxu0 0.0
  %509 = vmatpush1.msra.mxu0 0.0
  %510 = vmatprep.subr.mxu0 0.0
  %511 = vmatpush1.msra.mxu0 0.0
  %512 = vmatprep.subr.mxu0 0.0
  %513 = vmatpush1.msra.mxu0 0.0
  %514 = vmatprep.subr.mxu0 0.0
  %515 = vmatpush1.msra.mxu0 0.0
  %516 = vmatprep.subr.mxu0 0.0
  %517 = vmatpush1.msra.mxu0 0.0
  %518 = vmatprep.subr.mxu0 0.0
  %519 = vmatpush1.msra.mxu0 0.0
  %520 = vmatprep.subr.mxu0 0.0
  %521 = vmatpush1.msra.mxu0 0.0
  %522 = vmatprep.subr.mxu0 0.0
  %523 = vmatpush1.msra.mxu0 0.0
  %524 = vmatprep.subr.mxu0 0.0
  %525 = vmatpush1.msra.mxu0 0.0
  %526 = vmatprep.subr.mxu0 0.0
  %527 = vmatpush1.msra.mxu0 0.0
  %528 = vmatprep.mubr.f32.mxu0 0.0
  %529 = vmatmul.mubr.f32.gmra.mrb[0].mxu0 %v453
  %v530 = vpop.f32.mrb[0].mxu0
  %v531 = vadd.f32 %v435, %v530
  %v532 = vpop.f32.mrb[0].mxu0
  %533 = vmatprep.mubr.f32.mxu0 0.0
  %534 = vmatmul.mubr.f32.gmra.mrb[0].mxu0 %v456
  %v535 = vpop.f32.mrb[0].mxu0
  %v536 = vadd.f32 %v440, %v535
  %v537 = vpop.f32.mrb[0].mxu0
  %538 = vmatprep.mubr.f32.mxu0 0.0
  %539 = vmatmul.mubr.f32.gmra.mrb[0].mxu0 %v459
  %v540 = vpop.f32.mrb[0].mxu0
  %v541 = vadd.f32 %v445, %v540
  %v542 = vpop.f32.mrb[0].mxu0
  %543 = vmatprep.mubr.f32.mxu0 0.0
  %544 = vmatmul.mubr.f32.gmra.mrb[0].mxu0 %v462
  %v545 = vpop.f32.mrb[0].mxu0
  %v546 = vadd.f32 %v450, %v545
  %v547 = vpop.f32.mrb[0].mxu0
  %548 = vdwg.mxu0
  %v549 = vmax.f32 %v531, 0.0
  %v550 = vmax.f32 %v536, 0.0
  %v551 = vmax.f32 %v541, 0.0
  %v552 = vmax.f32 %v546, 0.0
  %v553 = vld [vmem:[%s7] sm:$0x3]
  %v554 = vld [vmem:[%s8] sm:$0x3]
  %556 = vset.pattern.permute.xlu0 0
  %557 = vperm.xlu0 %556, %v554
  %v558 = vpop.permute.xlu0 %557
  %v561 = vsel %vm92, %v553, 0
  %563 = vmatprep.subr.mxu0 0.0
  %564 = vmatpush1.msra.mxu0 %v549
  %565 = vmatprep.subr.mxu0 0.0
  %566 = vmatpush1.msra.mxu0 %v550
  %567 = vmatprep.subr.mxu0 0.0
  %568 = vmatpush1.msra.mxu0 %v551
  %569 = vmatprep.subr.mxu0 0.0
  %570 = vmatpush1.msra.mxu0 %v552
  %571 = vmatprep.subr.mxu0 0.0
  %572 = vmatpush1.msra.mxu0 0.0
  %573 = vmatprep.subr.mxu0 0.0
  %574 = vmatpush1.msra.mxu0 0.0
  %575 = vmatprep.subr.mxu0 0.0
  %576 = vmatpush1.msra.mxu0 0.0
  %577 = vmatprep.subr.mxu0 0.0
  %578 = vmatpush1.msra.mxu0 0.0
  %579 = vmatprep.subr.mxu0 0.0
  %580 = vmatpush1.msra.mxu0 0.0
  %581 = vmatprep.subr.mxu0 0.0
  %582 = vmatpush1.msra.mxu0 0.0
  %583 = vmatprep.subr.mxu0 0.0
  %584 = vmatpush1.msra.mxu0 0.0
  %585 = vmatprep.subr.mxu0 0.0
  %586 = vmatpush1.msra.mxu0 0.0
  %587 = vmatprep.subr.mxu0 0.0
  %588 = vmatpush1.msra.mxu0 0.0
  %589 = vmatprep.subr.mxu0 0.0
  %590 = vmatpush1.msra.mxu0 0.0
  %591 = vmatprep.subr.mxu0 0.0
  %592 = vmatpush1.msra.mxu0 0.0
  %593 = vmatprep.subr.mxu0 0.0
  %594 = vmatpush1.msra.mxu0 0.0
  %595 = vmatprep.subr.mxu0 0.0
  %596 = vmatpush1.msra.mxu0 0.0
  %597 = vmatprep.subr.mxu0 0.0
  %598 = vmatpush1.msra.mxu0 0.0
  %599 = vmatprep.subr.mxu0 0.0
  %600 = vmatpush1.msra.mxu0 0.0
  %601 = vmatprep.subr.mxu0 0.0
  %602 = vmatpush1.msra.mxu0 0.0
  %603 = vmatprep.subr.mxu0 0.0
  %604 = vmatpush1.msra.mxu0 0.0
  %605 = vmatprep.subr.mxu0 0.0
  %606 = vmatpush1.msra.mxu0 0.0
  %607 = vmatprep.subr.mxu0 0.0
  %608 = vmatpush1.msra.mxu0 0.0
  %609 = vmatprep.subr.mxu0 0.0
  %610 = vmatpush1.msra.mxu0 0.0
  %611 = vmatprep.subr.mxu0 0.0
  %612 = vmatpush1.msra.mxu0 0.0
  %613 = vmatprep.subr.mxu0 0.0
  %614 = vmatpush1.msra.mxu0 0.0
  %615 = vmatprep.subr.mxu0 0.0
  %616 = vmatpush1.msra.mxu0 0.0
  %617 = vmatprep.subr.mxu0 0.0
  %618 = vmatpush1.msra.mxu0 0.0
  %619 = vmatprep.subr.mxu0 0.0
  %620 = vmatpush1.msra.mxu0 0.0
  %621 = vmatprep.subr.mxu0 0.0
  %622 = vmatpush1.msra.mxu0 0.0
  %623 = vmatprep.subr.mxu0 0.0
  %624 = vmatpush1.msra.mxu0 0.0
  %625 = vmatprep.subr.mxu0 0.0
  %626 = vmatpush1.msra.mxu0 0.0
  %627 = vmatprep.mubr.f32.mxu0 0.0
  %628 = vmatmul.mubr.f32.gmra.mrb[0].mxu0 %v561
  %v629 = vpop.f32.mrb[0].mxu0
  %v630 = vadd.f32 %v558, %v629
  %v631 = vpop.f32.mrb[0].mxu0
  %632 = vdwg.mxu0
  %v633 = vsub.f32 0.0, %v630
  %v634 = vmul.f32 %v633, 1.442695
  %v635 = vpow.pop %v634
  %v636 = vadd.f32 %v635, 1.0
  %v637 = vrcp.pop %v636
  %v638 = vmul.f32 1.0, %v637
  %vm639 = vcmask 516096
  %640 = vst.msk [vmem:[%s9] sm:$0x1] %vm639, %v638
  %vm641 = vcmask 517121
  %642 = vst.msk [vmem:[%s9] sm:$0x2] %vm641, %v630
  // Predicated region
  $region38: #{fantasy_forward.1} parent=0 // pred_check
    _
  $region39: #{fantasy_forward.1} parent=0 // pred_check_branch
    %644 = sbr.rel (0) target = $region41
  $region40: #{fantasy_forward.1} parent=0 // pred_region
    _
  $region41: #{fantasy_forward.1} parent=0 // pred_fallthru
    _
  // Predicated region
  $region42: #{fantasy_forward.1} parent=0 // pred_check
    _
  $region43: #{fantasy_forward.1} parent=0 // pred_check_branch
    %646 = sbr.rel (0) target = $region45
  $region44: #{fantasy_forward.1} parent=0 // pred_region
    _
  $region45: #{fantasy_forward.1} parent=0 // pred_fallthru
    _

</llo_original>
